<compile_context>
chip_gen: v7x
topology: tpu7x:2x2x1
jax: 0.10.0
libtpu: 0.0.40
codegen_flags: <defaults>
</compile_context>

<pallas_src>
import functools

import jax
import jax.numpy as jnp
from jax.experimental import pallas as pl
from jax.experimental.pallas import tpu as pltpu

T_FIXED = 26           # hard-coded in the PyTorch module's einops rearrange
_EPS = 1e-5            # nn.InstanceNorm3d default

# Budget for the double-buffered (input + output) pipeline blocks; conservative so the
# same tiling also fits v7x's 64 MiB physical VMEM.
_PIPELINE_VMEM_BUDGET = 32 * 1024 * 1024


def _gin_kernel(x_ref, gamma_ref, beta_ref, o_ref, *, eps):
    # x_ref: (t, C_TILE, h*w) -- full (t, h, w) extent of one batch element for a
    # tile of channels, i.e. complete instance-norm groups (no cross-block reduce).
    x = x_ref[...].astype(jnp.float32)
    inv_n = 1.0 / float(x.shape[0] * x.shape[2])

    # Two-pass mean / biased variance per channel (reduce over t and h*w).
    row_sum = jnp.sum(x, axis=2, keepdims=True)              # (t, ct, 1)
    mean = jnp.sum(row_sum, axis=0, keepdims=True) * inv_n   # (1, ct, 1)
    d = x - mean
    row_ss = jnp.sum(d * d, axis=2, keepdims=True)           # (t, ct, 1)
    var = jnp.sum(row_ss, axis=0, keepdims=True) * inv_n     # (1, ct, 1)
    inv = jax.lax.rsqrt(var + eps)                           # (1, ct, 1)

    gamma = gamma_ref[...].astype(jnp.float32)[None]         # (1, ct, 1)
    beta = beta_ref[...].astype(jnp.float32)[None]           # (1, ct, 1)

    # Fused apply: y = x * scale + shift  (avoids a block-sized temp in the output path).
    scale = inv * gamma
    shift = beta - mean * scale
    o_ref[...] = (x * scale + shift).astype(o_ref.dtype)


def _pick_c_tile(c, t, hw, itemsize):
    """Largest channel tile (multiple of 8, dividing c) whose pipeline fits the budget."""
    def pipeline_bytes(ct):
        return 4 * t * ct * hw * itemsize  # double-buffered input + output blocks

    if c % 8 != 0:
        # Unaligned channel counts must use the full axis to satisfy (8,128) layout rules.
        return c
    for ct in range(c, 7, -8):
        if c % ct == 0 and pipeline_bytes(ct) <= _PIPELINE_VMEM_BUDGET:
            return ct
    # TODO(synk): if even an 8-channel tile overflows VMEM (very large h*w), split h*w
    # across an extra 'arbitrary' grid axis with a two-sweep stats-then-normalize scheme.
    return 8


def global_instance_norm(x, gamma, beta, *, t=T_FIXED, eps=_EPS):
    """x: ((b*t), c, h, w). gamma/beta: (c,). Returns same shape/dtype as x."""
    bt, c, h, w = x.shape
    assert bt % t == 0, f"leading dim must be divisible by t={t}"
    b = bt // t
    hw = h * w

    # Free (contiguous) reshapes only -- no transposes, no extra HBM passes.
    xr = x.reshape(bt, c, hw)
    gamma2 = gamma.reshape(c, 1)
    beta2 = beta.reshape(c, 1)

    itemsize = jnp.dtype(x.dtype).itemsize
    c_tile = _pick_c_tile(c, t, hw, itemsize)
    c_tiles = c // c_tile

    # Explicit VMEM budget: double-buffered in/out blocks + f32 compute temps + margin.
    block_in = t * c_tile * hw * itemsize
    block_f32 = t * c_tile * hw * 4
    vmem_need = 4 * block_in + 2 * block_f32 + (4 << 20)
    vmem_limit = int(min(max(vmem_need, 32 << 20), 64 << 20))

    out = pl.pallas_call(
        functools.partial(_gin_kernel, eps=eps),
        out_shape=jax.ShapeDtypeStruct((bt, c, hw), x.dtype),
        grid=(b, c_tiles),
        in_specs=[
            pl.BlockSpec((t, c_tile, hw), lambda i, j: (i, j, 0)),
            pl.BlockSpec((c_tile, 1), lambda i, j: (j, 0)),
            pl.BlockSpec((c_tile, 1), lambda i, j: (j, 0)),
        ],
        out_specs=pl.BlockSpec((t, c_tile, hw), lambda i, j: (i, j, 0)),
        compiler_params=pltpu.CompilerParams(
            dimension_semantics=("parallel", "parallel"),
            vmem_limit_bytes=vmem_limit,
        ),
    )(xr, gamma2, beta2)

    return out.reshape(bt, c, h, w)


def _reference(x, gamma, beta, *, t=T_FIXED, eps=_EPS):
    bt, c, h, w = x.shape
    b = bt // t
    xr = x.reshape(b, t, c, h, w).astype(jnp.float32)
    mean = xr.mean(axis=(1, 3, 4), keepdims=True)                 # per (b, c)
    var = ((xr - mean) ** 2).mean(axis=(1, 3, 4), keepdims=True)  # biased variance
    y = (xr - mean) / jnp.sqrt(var + eps)
    y = y * gamma.reshape(1, 1, c, 1, 1) + beta.reshape(1, 1, c, 1, 1)
    return y.reshape(bt, c, h, w).astype(x.dtype)


if __name__ == "__main__":
    key = jax.random.PRNGKey(0)
    kx, kg, kb = jax.random.split(key, 3)
    b, c, h, w = 2, 4, 16, 16
    x = jax.random.normal(kx, (b * T_FIXED, c, h, w), dtype=jnp.float32)

    # nn.InstanceNorm3d(affine=True) initializes weight=1, bias=0; use non-trivial
    # values here to also exercise the affine path.
    gamma = 1.0 + 0.1 * jax.random.normal(kg, (c,), dtype=jnp.float32)
    beta = 0.1 * jax.random.normal(kb, (c,), dtype=jnp.float32)

    out = jax.block_until_ready(global_instance_norm(x, gamma, beta))

    ref = _reference(x, gamma, beta)
    assert out.shape == x.shape and out.dtype == x.dtype
    assert jnp.allclose(out, ref, atol=1e-4, rtol=1e-4), "mismatch vs reference"

    print("KERNEL_OK")
</pallas_src>

<mosaic_0001>
module attributes {stable_mosaic.version = 11 : i64} {
  func.func @_gin_kernel(%arg0: i32, %arg1: i32, %arg2: memref<26x4x256xf32, #tpu.memory_space<vmem>>, %arg3: memref<4x1xf32, #tpu.memory_space<vmem>>, %arg4: memref<4x1xf32, #tpu.memory_space<vmem>>, %arg5: memref<26x4x256xf32, #tpu.memory_space<vmem>>) attributes {dimension_semantics = [#tpu.dimension_semantics<parallel>, #tpu.dimension_semantics<parallel>], iteration_bounds = array<i64: 2, 1>, scalar_prefetch = 0 : i64, scratch_operands = 0 : i64, tpu.core_type = #tpu.core_type<tc>, window_params = [{transform_indices = @transform_0, window_bounds = array<i64: 26, 4, 256>}, {transform_indices = @transform_1, window_bounds = array<i64: 4, 1>}, {transform_indices = @transform_2, window_bounds = array<i64: 4, 1>}, {transform_indices = @transform_3, window_bounds = array<i64: 26, 4, 256>}]} {
    %c0 = arith.constant 0 : index
    %c0_0 = arith.constant 0 : index
    %c0_1 = arith.constant 0 : index
    %0 = vector.load %arg2[%c0, %c0_0, %c0_1] : memref<26x4x256xf32, #tpu.memory_space<vmem>>, vector<26x4x256xf32>
    %cst = arith.constant dense<0.000000e+00> : vector<26x4xf32>
    %1 = vector.multi_reduction <add>, %0, %cst [2] : vector<26x4x256xf32> to vector<26x4xf32>
    %2 = vector.shape_cast %1 : vector<26x4xf32> to vector<26x4x1xf32>
    %cst_2 = arith.constant dense<0.000000e+00> : vector<4x1xf32>
    %3 = vector.multi_reduction <add>, %2, %cst_2 [0] : vector<26x4x1xf32> to vector<4x1xf32>
    %4 = vector.shape_cast %3 : vector<4x1xf32> to vector<1x4x1xf32>
    %cst_3 = arith.constant 1.5024039E-4 : f32
    %5 = vector.broadcast %cst_3 : f32 to vector<1x4x1xf32>
    %6 = arith.mulf %4, %5 : vector<1x4x1xf32>
    %7 = vector.broadcast %6 : vector<1x4x1xf32> to vector<26x4x256xf32>
    %8 = arith.subf %0, %7 : vector<26x4x256xf32>
    %9 = arith.mulf %8, %8 : vector<26x4x256xf32>
    %cst_4 = arith.constant dense<0.000000e+00> : vector<26x4xf32>
    %10 = vector.multi_reduction <add>, %9, %cst_4 [2] : vector<26x4x256xf32> to vector<26x4xf32>
    %11 = vector.shape_cast %10 : vector<26x4xf32> to vector<26x4x1xf32>
    %cst_5 = arith.constant dense<0.000000e+00> : vector<4x1xf32>
    %12 = vector.multi_reduction <add>, %11, %cst_5 [0] : vector<26x4x1xf32> to vector<4x1xf32>
    %13 = vector.shape_cast %12 : vector<4x1xf32> to vector<1x4x1xf32>
    %cst_6 = arith.constant 1.5024039E-4 : f32
    %14 = vector.broadcast %cst_6 : f32 to vector<1x4x1xf32>
    %15 = arith.mulf %13, %14 : vector<1x4x1xf32>
    %cst_7 = arith.constant 9.99999974E-6 : f32
    %16 = vector.broadcast %cst_7 : f32 to vector<1x4x1xf32>
    %17 = arith.addf %15, %16 : vector<1x4x1xf32>
    %18 = math.rsqrt %17 : vector<1x4x1xf32>
    %c0_8 = arith.constant 0 : index
    %c0_9 = arith.constant 0 : index
    %19 = vector.load %arg3[%c0_8, %c0_9] : memref<4x1xf32, #tpu.memory_space<vmem>>, vector<4x1xf32>
    %20 = vector.shape_cast %19 : vector<4x1xf32> to vector<1x4x1xf32>
    %c0_10 = arith.constant 0 : index
    %c0_11 = arith.constant 0 : index
    %21 = vector.load %arg4[%c0_10, %c0_11] : memref<4x1xf32, #tpu.memory_space<vmem>>, vector<4x1xf32>
    %22 = vector.shape_cast %21 : vector<4x1xf32> to vector<1x4x1xf32>
    %23 = arith.mulf %18, %20 : vector<1x4x1xf32>
    %24 = arith.mulf %6, %23 : vector<1x4x1xf32>
    %25 = arith.subf %22, %24 : vector<1x4x1xf32>
    %26 = vector.broadcast %23 : vector<1x4x1xf32> to vector<26x4x256xf32>
    %27 = arith.mulf %0, %26 : vector<26x4x256xf32>
    %28 = vector.broadcast %25 : vector<1x4x1xf32> to vector<26x4x256xf32>
    %29 = arith.addf %27, %28 : vector<26x4x256xf32>
    %c0_12 = arith.constant 0 : index
    %c0_13 = arith.constant 0 : index
    %c0_14 = arith.constant 0 : index
    %30 = vector.load %arg5[%c0_12, %c0_13, %c0_14] : memref<26x4x256xf32, #tpu.memory_space<vmem>>, vector<26x4x256xf32>
    tpu.vector_store %arg5[%c0_12, %c0_13, %c0_14], %29 {strides = array<i32>} : memref<26x4x256xf32, #tpu.memory_space<vmem>>, vector<26x4x256xf32>,
    return
  }
  func.func @transform_0(%arg0: i32, %arg1: i32) -> (i32, i32, i32) {
    %c0_i32 = arith.constant 0 : i32
    %c0_i32_0 = arith.constant 0 : i32
    return %arg0, %arg1, %c0_i32 : i32, i32, i32
  }
  func.func @transform_1(%arg0: i32, %arg1: i32) -> (i32, i32) {
    %c0_i32 = arith.constant 0 : i32
    %c0_i32_0 = arith.constant 0 : i32
    return %arg1, %c0_i32 : i32, i32
  }
  func.func @transform_2(%arg0: i32, %arg1: i32) -> (i32, i32) {
    %c0_i32 = arith.constant 0 : i32
    %c0_i32_0 = arith.constant 0 : i32
    return %arg1, %c0_i32 : i32, i32
  }
  func.func @transform_3(%arg0: i32, %arg1: i32) -> (i32, i32, i32) {
    %c0_i32 = arith.constant 0 : i32
    %c0_i32_0 = arith.constant 0 : i32
    return %arg0, %arg1, %c0_i32 : i32, i32, i32
  }
}

</mosaic_0001>

<llo_original>
// kernel: tpu_custom_call.1
$region0: #{tpu_custom_call.1}
  #allocation0 [shape = 'u32[]', space=smem, size = 0x4, offset = 0x4, fixed_abs, tag = 'smem constant byte address 0x4 - core index']
  #allocation1 [shape = 'u32[144,128]{1,0:T(1,128)}', space=vmem, size = 0x12000, scoped, tag = 'internal scratch']
  %s0 = inlined_call_operand.hbm [shape: f32[52,4,256], index: 0, kind: input, shape index: {}]
  %s1 = inlined_call_operand.vmem [shape: f32[4,1], index: 1, kind: input, shape index: {}]
  %s2 = inlined_call_operand.vmem [shape: f32[4,1], index: 2, kind: input, shape index: {}]
  %s3 = inlined_call_operand.hbm [shape: f32[52,4,256], index: 3, kind: output, shape index: {}]
  %s4 = sld [smem:[#allocation0]]
  $region49: #{tpu_custom_call.1} parent=0
    _
  %s6 = ssub.s32 1, %s4
  %s7 = scalar_select 0, %s6, %s4
  $region1: #{tpu_custom_call.1} parent=0
    #allocation2 [shape = 'u8[212992]{0}', space=vmem, size = 0x34000, scoped, tag = 'input window, operand 0']
    #allocation3 [shape = 's32[2]{0}', space=sflag, size = 0x8, scoped, tag = 'scoped memory for tpu_custom_call.1']
    #allocation4 [shape = 's32[2]{0}', space=sflag, size = 0x8, scoped, tag = 'scoped memory for tpu_custom_call.1']
    #allocation5 [shape = 'u8[212992]{0}', space=vmem, size = 0x34000, scoped, tag = 'output window, operand 0']
    %8 = vsyncpa [#allocation3], 0
    %s9 = scalar_lea.sflag [#allocation3], 1
    %10 = vsyncpa %s9, 0
    %11 = vsyncpa [#allocation4], 0
    %s12 = scalar_lea.sflag [#allocation4], 1
    %13 = vsyncpa %s12, 0
    loop: start=0, step=1, limit=4
    $region2: #{tpu_custom_call.1} parent=1 // loop_pre_header
      _
    $region3: #{tpu_custom_call.1} parent=1 // loop_header
      %s15 = sphi 0, %s19
      %p16 = scmp.ge.s32.totalorder %s15, 4
      %s22 = sphi 0, %s34
      %s23 = sphi 0, %s30
      %s24 = sphi 0, %s22
      %s25 = sphi 0, %s23
      %s26 = sphi 0, %s24
      %s27 = sphi 0, %s25
      %s39 = sphi 0, %s41
      %s42 = sphi 0, %s39
      %s43 = sphi 0, %s42
      %s59 = sphi 0, %s43
      %s65 = sphi 0, %s67
      %s68 = sphi 0, %s65
      %s69 = sphi 0, %s68
      %s85 = sphi 0, %s69
      %s91 = sphi 0, %s93
      %s94 = sphi 0, %s91
      %s95 = sphi 0, %s94
      %s111 = sphi 0, %s95
      %s119 = sphi 0, %s121
      %s122 = sphi 0, %s119
      %s123 = sphi 0, %s122
      %s139 = sphi 0, %s123
    $region4: #{tpu_custom_call.1} parent=1 // loop_header_branch
      %18 = sbr.rel (%p16) target = $region8
    $region5: #{tpu_custom_call.1} parent=1 // loop_body
      %s20 = ssub.s32 %s15, 1
      %s21 = ssub.s32 %s15, 2
      %s28 = sadd.s32 1, %s23
      %p29 = scmp.ge.s32.totalorder %s28, 1
      %s30 = scalar_select %p29, 0, %s28
      %s31 = sadd.s32 1, %s22
      %s32 = scalar_select %p29, %s31, %s22
      %p33 = scmp.ge.s32.totalorder %s32, 2
      %s34 = scalar_select %p33, 0, %s32
      %s35 = ssub.s32 %s22, %s34
      %s36 = ssub.s32 %s23, %s30
      %s37 = sor.u32 %s35, %s36
      %p38 = scmp.eq.s32.totalorder %s37, 0
      %s40 = sadd.s32 %s39, 1
      %s41 = scalar_select %p38, %s39, %s40
      %p44 = pneg %p38
      %p45 = scmp.eq.s32.totalorder %s15, 1
      %p46 = por %p44, %p45
      %p47 = scmp.ne.s32.totalorder %s39, %s42
      %p48 = scmp.eq.s32.totalorder %s15, 0
      %p49 = por %p47, %p48
      %p50 = scmp.ne.s32.totalorder %s39, %s42
      %p51 = scmp.eq.s32.totalorder %s20, 1
      %p52 = por %p50, %p51
      %p53 = scmp.ne.s32.totalorder %s42, %s43
      %p54 = scmp.eq.s32.totalorder %s20, 0
      %p55 = por %p53, %p54
      %p56 = scmp.ne.s32.totalorder %s42, %s43
      %p57 = scmp.eq.s32.totalorder %s21, 1
      %p58 = por %p56, %p57
      %p60 = scmp.ne.s32.totalorder %s43, %s59
      %p61 = scmp.eq.s32.totalorder %s21, 0
      %p62 = por %p60, %p61
      %s63 = ssub.s32 %s23, %s30
      %p64 = scmp.eq.s32.totalorder %s63, 0
      %s66 = sadd.s32 %s65, 1
      %s67 = scalar_select %p64, %s65, %s66
      %p70 = pneg %p64
      %p71 = scmp.eq.s32.totalorder %s15, 1
      %p72 = por %p70, %p71
      %p73 = scmp.ne.s32.totalorder %s65, %s68
      %p74 = scmp.eq.s32.totalorder %s15, 0
      %p75 = por %p73, %p74
      %p76 = scmp.ne.s32.totalorder %s65, %s68
      %p77 = scmp.eq.s32.totalorder %s20, 1
      %p78 = por %p76, %p77
      %p79 = scmp.ne.s32.totalorder %s68, %s69
      %p80 = scmp.eq.s32.totalorder %s20, 0
      %p81 = por %p79, %p80
      %p82 = scmp.ne.s32.totalorder %s68, %s69
      %p83 = scmp.eq.s32.totalorder %s21, 1
      %p84 = por %p82, %p83
      %p86 = scmp.ne.s32.totalorder %s69, %s85
      %p87 = scmp.eq.s32.totalorder %s21, 0
      %p88 = por %p86, %p87
      %s89 = ssub.s32 %s23, %s30
      %p90 = scmp.eq.s32.totalorder %s89, 0
      %s92 = sadd.s32 %s91, 1
      %s93 = scalar_select %p90, %s91, %s92
      %p96 = pneg %p90
      %p97 = scmp.eq.s32.totalorder %s15, 1
      %p98 = por %p96, %p97
      %p99 = scmp.ne.s32.totalorder %s91, %s94
      %p100 = scmp.eq.s32.totalorder %s15, 0
      %p101 = por %p99, %p100
      %p102 = scmp.ne.s32.totalorder %s91, %s94
      %p103 = scmp.eq.s32.totalorder %s20, 1
      %p104 = por %p102, %p103
      %p105 = scmp.ne.s32.totalorder %s94, %s95
      %p106 = scmp.eq.s32.totalorder %s20, 0
      %p107 = por %p105, %p106
      %p108 = scmp.ne.s32.totalorder %s94, %s95
      %p109 = scmp.eq.s32.totalorder %s21, 1
      %p110 = por %p108, %p109
      %p112 = scmp.ne.s32.totalorder %s95, %s111
      %p113 = scmp.eq.s32.totalorder %s21, 0
      %p114 = por %p112, %p113
      %s115 = ssub.s32 %s22, %s34
      %s116 = ssub.s32 %s23, %s30
      %s117 = sor.u32 %s115, %s116
      %p118 = scmp.eq.s32.totalorder %s117, 0
      %s120 = sadd.s32 %s119, 1
      %s121 = scalar_select %p118, %s119, %s120
      %p124 = pneg %p118
      %p125 = scmp.eq.s32.totalorder %s15, 1
      %p126 = por %p124, %p125
      %p127 = scmp.ne.s32.totalorder %s119, %s122
      %p128 = scmp.eq.s32.totalorder %s15, 0
      %p129 = por %p127, %p128
      %p130 = scmp.ne.s32.totalorder %s119, %s122
      %p131 = scmp.eq.s32.totalorder %s20, 1
      %p132 = por %p130, %p131
      %p133 = scmp.ne.s32.totalorder %s122, %s123
      %p134 = scmp.eq.s32.totalorder %s20, 0
      %p135 = por %p133, %p134
      %p136 = scmp.ne.s32.totalorder %s122, %s123
      %p137 = scmp.eq.s32.totalorder %s21, 1
      %p138 = por %p136, %p137
      %p140 = scmp.ne.s32.totalorder %s123, %s139
      %p141 = scmp.eq.s32.totalorder %s21, 0
      %p142 = por %p140, %p141
      %p143 = scmp.le.s32.totalorder 1, %s15
      %p144 = scmp.lt.s32.totalorder %s15, 3
      %p145 = pnand %p143, %p144
      %p146 = pneg %p145
      // Predicated region
      $region9: #{tpu_custom_call.1} parent=5 // pred_check
        _
      $region10: #{tpu_custom_call.1} parent=5 // pred_check_branch
        %148 = sbr.rel (%p145) target = $region12
      $region11: #{tpu_custom_call.1} parent=5 // pred_region
        %s149 = ssub.s32 %s15, 1
        // Predicated region
        $region13: #{tpu_custom_call.1} parent=11 // pred_check
          %p150 = pneg %p81
        $region14: #{tpu_custom_call.1} parent=11 // pred_check_branch
          %152 = sbr.rel (%p150) target = $region16
        $region15: #{tpu_custom_call.1} parent=11 // pred_region
          %p153 = scmp.lt.s32.totalorder %s25, 0
          %s154 = scalar_select %p153, %s25, 0
          %s155 = smul.addr %s154, 4
          %s156 = scalar_lea.vmem %s1, %s155
        $region16: #{tpu_custom_call.1} parent=11 // pred_fallthru
          _
        // Predicated region
        $region17: #{tpu_custom_call.1} parent=11 // pred_check
          %p157 = pneg %p107
        $region18: #{tpu_custom_call.1} parent=11 // pred_check_branch
          %159 = sbr.rel (%p157) target = $region20
        $region19: #{tpu_custom_call.1} parent=11 // pred_region
          %p160 = scmp.lt.s32.totalorder %s25, 0
          %s161 = scalar_select %p160, %s25, 0
          %s162 = smul.addr %s161, 4
          %s163 = scalar_lea.vmem %s2, %s162
        $region20: #{tpu_custom_call.1} parent=11 // pred_fallthru
          _
      $region12: #{tpu_custom_call.1} parent=5 // pred_fallthru
        _
      %p164 = scmp.lt.s32.totalorder %s15, 2
      // Predicated region
      $region21: #{tpu_custom_call.1} parent=5 // pred_check
        %p165 = pneg %p164
      $region22: #{tpu_custom_call.1} parent=5 // pred_check_branch
        %167 = sbr.rel (%p165) target = $region24
      $region23: #{tpu_custom_call.1} parent=5 // pred_region
        // Predicated region
        $region25: #{tpu_custom_call.1} parent=23 // pred_check
          %p168 = pneg %p49
        $region26: #{tpu_custom_call.1} parent=23 // pred_check_branch
          %170 = sbr.rel (%p168) target = $region28
        $region27: #{tpu_custom_call.1} parent=23 // pred_region
          %s171 = sand.u32 %s39, 1
          %s172 = scalar_lea.sflag [#allocation3], %s171
          %s173 = sand.u32 %s39, 1
          %s174 = smul.addr %s173, 208
          %s175 = scalar_lea.vmem [#allocation2], %s174
          %s176 = smul.u32 26, %s22
          %s178 = ssub.s32 3328, 3328
          %179 = vsyncadd %s172, %s178
          %s180 = smul.addr %s23, 2
          %s181 = smul.addr %s176, 2
          %s182 = sadd.s32 %s180, %s181
          %s183 = smul.addr %s182, 64
          %s184 = scalar_lea.hbm %s0, %s183
          %s185 = sshll.u32 %s175, 4
          %s186 = int_to_ptr.vmem [resolvable:$true] %s185
          %191 = dma.hbm_to_vmem [thread:$0]  %s184, 3328, %s186, %s172, 128, 128, 8
        $region28: #{tpu_custom_call.1} parent=23 // pred_fallthru
          _
      $region24: #{tpu_custom_call.1} parent=5 // pred_fallthru
        _
      %p192 = scmp.le.s32.totalorder 1, %s15
      %p193 = scmp.lt.s32.totalorder %s15, 3
      %p194 = pnand %p192, %p193
      %p195 = pneg %p194
      // Predicated region
      $region29: #{tpu_custom_call.1} parent=5 // pred_check
        _
      $region30: #{tpu_custom_call.1} parent=5 // pred_check_branch
        %197 = sbr.rel (%p194) target = $region32
      $region31: #{tpu_custom_call.1} parent=5 // pred_region
        %s198 = ssub.s32 %s15, 1
        %s199 = sand.u32 %s42, 1
        %s200 = scalar_lea.sflag [#allocation3], %s199
        %s201 = sand.u32 %s42, 1
        %s202 = smul.addr %s201, 208
        %s203 = scalar_lea.vmem [#allocation2], %s202
        // Predicated region
        $region33: #{tpu_custom_call.1} parent=31 // pred_check
          %p204 = pneg %p55
        $region34: #{tpu_custom_call.1} parent=31 // pred_check_branch
          %206 = sbr.rel (%p204) target = $region36
        $region35: #{tpu_custom_call.1} parent=31 // pred_region
          %207 = dma.done %s200, 3328
        $region36: #{tpu_custom_call.1} parent=31 // pred_fallthru
          _
        %s208 = sand.u32 %s42, 1
        %s209 = scalar_lea.sflag [#allocation3], %s208
        %s210 = sand.u32 %s42, 1
        %s211 = smul.addr %s210, 208
        %s212 = scalar_lea.vmem [#allocation2], %s211
        %p213 = pneg %p55
        %p214 = pneg %p52
        %p215 = scmp.lt.s32.totalorder %s25, 0
        %s216 = scalar_select %p215, %s25, 0
        %s217 = smul.addr %s216, 4
        %s218 = scalar_lea.vmem %s1, %s217
        %p219 = pneg %p81
        %p220 = pneg %p78
        %p221 = scmp.lt.s32.totalorder %s25, 0
        %s222 = scalar_select %p221, %s25, 0
        %s223 = smul.addr %s222, 4
        %s224 = scalar_lea.vmem %s2, %s223
        %p225 = pneg %p107
        %p226 = pneg %p104
        %p227 = pneg %p135
        %p228 = pneg %p132
        %s229 = sand.u32 %s122, 1
        %s230 = scalar_lea.sflag [#allocation4], %s229
        %s231 = sand.u32 %s122, 1
        %s232 = smul.addr %s231, 208
        %s233 = scalar_lea.vmem [#allocation5], %s232
        %s234 = smul.u32 26, %s24
        %p235 = scmp.lt.s32.totalorder %s25, 0
        %s236 = scalar_select %p235, %s25, 0
        %s237 = smul.addr %s236, 4
        %s238 = scalar_lea.vmem %s1, %s237
        %p239 = scmp.lt.s32.totalorder %s25, 0
        %s240 = scalar_select %p239, %s25, 0
        %s241 = smul.addr %s240, 4
        %s242 = scalar_lea.vmem %s2, %s241
        %s243 = smul.u32 26, %s24
        %v244 = vld [vmem:[%s203] sm:$0xff]
        %v245 = vld [vmem:[%s203 + $0x8] sm:$0xff]
        %v246 = vld [vmem:[%s203 + $0x10] sm:$0xff]
        %v247 = vld [vmem:[%s203 + $0x18] sm:$0xff]
        %v248 = vld [vmem:[%s203 + $0x20] sm:$0xff]
        %v249 = vld [vmem:[%s203 + $0x28] sm:$0xff]
        %v250 = vld [vmem:[%s203 + $0x30] sm:$0xff]
        %v251 = vld [vmem:[%s203 + $0x38] sm:$0xff]
        %v252 = vld [vmem:[%s203 + $0x40] sm:$0xff]
        %v253 = vld [vmem:[%s203 + $0x48] sm:$0xff]
        %v254 = vld [vmem:[%s203 + $0x50] sm:$0xff]
        %v255 = vld [vmem:[%s203 + $0x58] sm:$0xff]
        %v256 = vld [vmem:[%s203 + $0x60] sm:$0xff]
        %v257 = vld [vmem:[%s203 + $0x68] sm:$0xff]
        %v258 = vld [vmem:[%s203 + $0x70] sm:$0xff]
        %v259 = vld [vmem:[%s203 + $0x78] sm:$0xff]
        %v260 = vld [vmem:[%s203 + $0x80] sm:$0xff]
        %v261 = vld [vmem:[%s203 + $0x88] sm:$0xff]
        %v262 = vld [vmem:[%s203 + $0x90] sm:$0xff]
        %v263 = vld [vmem:[%s203 + $0x98] sm:$0xff]
        %v264 = vld [vmem:[%s203 + $0xa0] sm:$0xff]
        %v265 = vld [vmem:[%s203 + $0xa8] sm:$0xff]
        %v266 = vld [vmem:[%s203 + $0xb0] sm:$0xff]
        %v267 = vld [vmem:[%s203 + $0xb8] sm:$0xff]
        %v268 = vld [vmem:[%s203 + $0xc0] sm:$0xff]
        %v269 = vld [vmem:[%s203 + $0xc8] sm:$0xff]
        %v296 = vcombine.high %v244, %v244
        %v297 = vcombine.high %v245, %v245
        %v298 = vcombine.high %v246, %v246
        %v299 = vcombine.high %v247, %v247
        %v300 = vcombine.high %v248, %v248
        %v301 = vcombine.high %v249, %v249
        %v302 = vcombine.high %v250, %v250
        %v303 = vcombine.high %v251, %v251
        %v304 = vcombine.high %v252, %v252
        %v305 = vcombine.high %v253, %v253
        %v306 = vcombine.high %v254, %v254
        %v307 = vcombine.high %v255, %v255
        %v308 = vcombine.high %v256, %v256
        %v309 = vcombine.high %v257, %v257
        %v310 = vcombine.high %v258, %v258
        %v311 = vcombine.high %v259, %v259
        %v312 = vcombine.high %v260, %v260
        %v313 = vcombine.high %v261, %v261
        %v314 = vcombine.high %v262, %v262
        %v315 = vcombine.high %v263, %v263
        %v316 = vcombine.high %v264, %v264
        %v317 = vcombine.high %v265, %v265
        %v318 = vcombine.high %v266, %v266
        %v319 = vcombine.high %v267, %v267
        %v320 = vcombine.high %v268, %v268
        %v321 = vcombine.high %v269, %v269
        %vm348 = vcmask 1043456
        %v349 = vsel %vm348, %v244, 0.0
        %v350 = vsel %vm348, %v296, 0.0
        %v351 = vadd.f32 %v349, %v350
        %352 = vadd.xlane.f32.xlu0 %v351
        %v353 = vpop.xlane.xlu0 %352
        %v354 = vsel %vm348, %v245, 0.0
        %v355 = vsel %vm348, %v297, 0.0
        %v356 = vadd.f32 %v354, %v355
        %357 = vadd.xlane.f32.xlu0 %v356
        %v358 = vpop.xlane.xlu0 %357
        %v359 = vsel %vm348, %v246, 0.0
        %v360 = vsel %vm348, %v298, 0.0
        %v361 = vadd.f32 %v359, %v360
        %362 = vadd.xlane.f32.xlu0 %v361
        %v363 = vpop.xlane.xlu0 %362
        %v364 = vsel %vm348, %v247, 0.0
        %v365 = vsel %vm348, %v299, 0.0
        %v366 = vadd.f32 %v364, %v365
        %367 = vadd.xlane.f32.xlu0 %v366
        %v368 = vpop.xlane.xlu0 %367
        %v369 = vsel %vm348, %v248, 0.0
        %v370 = vsel %vm348, %v300, 0.0
        %v371 = vadd.f32 %v369, %v370
        %372 = vadd.xlane.f32.xlu0 %v371
        %v373 = vpop.xlane.xlu0 %372
        %v374 = vsel %vm348, %v249, 0.0
        %v375 = vsel %vm348, %v301, 0.0
        %v376 = vadd.f32 %v374, %v375
        %377 = vadd.xlane.f32.xlu0 %v376
        %v378 = vpop.xlane.xlu0 %377
        %v379 = vsel %vm348, %v250, 0.0
        %v380 = vsel %vm348, %v302, 0.0
        %v381 = vadd.f32 %v379, %v380
        %382 = vadd.xlane.f32.xlu0 %v381
        %v383 = vpop.xlane.xlu0 %382
        %v384 = vsel %vm348, %v251, 0.0
        %v385 = vsel %vm348, %v303, 0.0
        %v386 = vadd.f32 %v384, %v385
        %387 = vadd.xlane.f32.xlu0 %v386
        %v388 = vpop.xlane.xlu0 %387
        %v389 = vsel %vm348, %v252, 0.0
        %v390 = vsel %vm348, %v304, 0.0
        %v391 = vadd.f32 %v389, %v390
        %392 = vadd.xlane.f32.xlu0 %v391
        %v393 = vpop.xlane.xlu0 %392
        %v394 = vsel %vm348, %v253, 0.0
        %v395 = vsel %vm348, %v305, 0.0
        %v396 = vadd.f32 %v394, %v395
        %397 = vadd.xlane.f32.xlu0 %v396
        %v398 = vpop.xlane.xlu0 %397
        %v399 = vsel %vm348, %v254, 0.0
        %v400 = vsel %vm348, %v306, 0.0
        %v401 = vadd.f32 %v399, %v400
        %402 = vadd.xlane.f32.xlu0 %v401
        %v403 = vpop.xlane.xlu0 %402
        %v404 = vsel %vm348, %v255, 0.0
        %v405 = vsel %vm348, %v307, 0.0
        %v406 = vadd.f32 %v404, %v405
        %407 = vadd.xlane.f32.xlu0 %v406
        %v408 = vpop.xlane.xlu0 %407
        %v409 = vsel %vm348, %v256, 0.0
        %v410 = vsel %vm348, %v308, 0.0
        %v411 = vadd.f32 %v409, %v410
        %412 = vadd.xlane.f32.xlu0 %v411
        %v413 = vpop.xlane.xlu0 %412
        %v414 = vsel %vm348, %v257, 0.0
        %v415 = vsel %vm348, %v309, 0.0
        %v416 = vadd.f32 %v414, %v415
        %417 = vadd.xlane.f32.xlu0 %v416
        %v418 = vpop.xlane.xlu0 %417
        %v419 = vsel %vm348, %v258, 0.0
        %v420 = vsel %vm348, %v310, 0.0
        %v421 = vadd.f32 %v419, %v420
        %422 = vadd.xlane.f32.xlu0 %v421
        %v423 = vpop.xlane.xlu0 %422
        %v424 = vsel %vm348, %v259, 0.0
        %v425 = vsel %vm348, %v311, 0.0
        %v426 = vadd.f32 %v424, %v425
        %427 = vadd.xlane.f32.xlu0 %v426
        %v428 = vpop.xlane.xlu0 %427
        %v429 = vsel %vm348, %v260, 0.0
        %v430 = vsel %vm348, %v312, 0.0
        %v431 = vadd.f32 %v429, %v430
        %432 = vadd.xlane.f32.xlu0 %v431
        %v433 = vpop.xlane.xlu0 %432
        %v434 = vsel %vm348, %v261, 0.0
        %v435 = vsel %vm348, %v313, 0.0
        %v436 = vadd.f32 %v434, %v435
        %437 = vadd.xlane.f32.xlu0 %v436
        %v438 = vpop.xlane.xlu0 %437
        %v439 = vsel %vm348, %v262, 0.0
        %v440 = vsel %vm348, %v314, 0.0
        %v441 = vadd.f32 %v439, %v440
        %442 = vadd.xlane.f32.xlu0 %v441
        %v443 = vpop.xlane.xlu0 %442
        %v444 = vsel %vm348, %v263, 0.0
        %v445 = vsel %vm348, %v315, 0.0
        %v446 = vadd.f32 %v444, %v445
        %447 = vadd.xlane.f32.xlu0 %v446
        %v448 = vpop.xlane.xlu0 %447
        %v449 = vsel %vm348, %v264, 0.0
        %v450 = vsel %vm348, %v316, 0.0
        %v451 = vadd.f32 %v449, %v450
        %452 = vadd.xlane.f32.xlu0 %v451
        %v453 = vpop.xlane.xlu0 %452
        %v454 = vsel %vm348, %v265, 0.0
        %v455 = vsel %vm348, %v317, 0.0
        %v456 = vadd.f32 %v454, %v455
        %457 = vadd.xlane.f32.xlu0 %v456
        %v458 = vpop.xlane.xlu0 %457
        %v459 = vsel %vm348, %v266, 0.0
        %v460 = vsel %vm348, %v318, 0.0
        %v461 = vadd.f32 %v459, %v460
        %462 = vadd.xlane.f32.xlu0 %v461
        %v463 = vpop.xlane.xlu0 %462
        %v464 = vsel %vm348, %v267, 0.0
        %v465 = vsel %vm348, %v319, 0.0
        %v466 = vadd.f32 %v464, %v465
        %467 = vadd.xlane.f32.xlu0 %v466
        %v468 = vpop.xlane.xlu0 %467
        %v469 = vsel %vm348, %v268, 0.0
        %v470 = vsel %vm348, %v320, 0.0
        %v471 = vadd.f32 %v469, %v470
        %472 = vadd.xlane.f32.xlu0 %v471
        %v473 = vpop.xlane.xlu0 %472
        %v474 = vsel %vm348, %v269, 0.0
        %v475 = vsel %vm348, %v321, 0.0
        %v476 = vadd.f32 %v474, %v475
        %477 = vadd.xlane.f32.xlu0 %v476
        %v478 = vpop.xlane.xlu0 %477
        %v479 = vsel %vm348, %v353, 0.0
        %v480 = vsel %vm348, %v358, 0.0
        %v481 = vadd.f32 %v479, %v480
        %v482 = vsel %vm348, %v363, 0.0
        %v483 = vadd.f32 %v481, %v482
        %v484 = vsel %vm348, %v368, 0.0
        %v485 = vadd.f32 %v483, %v484
        %v486 = vsel %vm348, %v373, 0.0
        %v487 = vadd.f32 %v485, %v486
        %v488 = vsel %vm348, %v378, 0.0
        %v489 = vadd.f32 %v487, %v488
        %v490 = vsel %vm348, %v383, 0.0
        %v491 = vadd.f32 %v489, %v490
        %v492 = vsel %vm348, %v388, 0.0
        %v493 = vadd.f32 %v491, %v492
        %v494 = vsel %vm348, %v393, 0.0
        %v495 = vadd.f32 %v493, %v494
        %v496 = vsel %vm348, %v398, 0.0
        %v497 = vadd.f32 %v495, %v496
        %v498 = vsel %vm348, %v403, 0.0
        %v499 = vadd.f32 %v497, %v498
        %v500 = vsel %vm348, %v408, 0.0
        %v501 = vadd.f32 %v499, %v500
        %v502 = vsel %vm348, %v413, 0.0
        %v503 = vadd.f32 %v501, %v502
        %v504 = vsel %vm348, %v418, 0.0
        %v505 = vadd.f32 %v503, %v504
        %v506 = vsel %vm348, %v423, 0.0
        %v507 = vadd.f32 %v505, %v506
        %v508 = vsel %vm348, %v428, 0.0
        %v509 = vadd.f32 %v507, %v508
        %v510 = vsel %vm348, %v433, 0.0
        %v511 = vadd.f32 %v509, %v510
        %v512 = vsel %vm348, %v438, 0.0
        %v513 = vadd.f32 %v511, %v512
        %v514 = vsel %vm348, %v443, 0.0
        %v515 = vadd.f32 %v513, %v514
        %v516 = vsel %vm348, %v448, 0.0
        %v517 = vadd.f32 %v515, %v516
        %v518 = vsel %vm348, %v453, 0.0
        %v519 = vadd.f32 %v517, %v518
        %v520 = vsel %vm348, %v458, 0.0
        %v521 = vadd.f32 %v519, %v520
        %v522 = vsel %vm348, %v463, 0.0
        %v523 = vadd.f32 %v521, %v522
        %v524 = vsel %vm348, %v468, 0.0
        %v525 = vadd.f32 %v523, %v524
        %v526 = vsel %vm348, %v473, 0.0
        %v527 = vadd.f32 %v525, %v526
        %v528 = vsel %vm348, %v478, 0.0
        %v529 = vadd.f32 %v527, %v528
        %v530 = vmul.f32 %v529, 0.00015024039
        %v533 = vunpack.c.l.s4 839922192
        %v534 = vunpack.c.0.s8 %v533
        %v535 = vlaneseq
        %v536 = vshrl.u32 %v535, 7
        %v537 = vsub.s32 %v534, %v536
        %v538 = vrot.slane %v530, %v537
        %v540 = vsub.f32 %v244, %v538
        %v541 = vsub.f32 %v245, %v538
        %v542 = vsub.f32 %v246, %v538
        %v543 = vsub.f32 %v247, %v538
        %v544 = vsub.f32 %v248, %v538
        %v545 = vsub.f32 %v249, %v538
        %v546 = vsub.f32 %v250, %v538
        %v547 = vsub.f32 %v251, %v538
        %v548 = vsub.f32 %v252, %v538
        %v549 = vsub.f32 %v253, %v538
        %v550 = vsub.f32 %v254, %v538
        %v551 = vsub.f32 %v255, %v538
        %v552 = vsub.f32 %v256, %v538
        %v553 = vsub.f32 %v257, %v538
        %v554 = vsub.f32 %v258, %v538
        %v555 = vsub.f32 %v259, %v538
        %v556 = vsub.f32 %v260, %v538
        %v557 = vsub.f32 %v261, %v538
        %v558 = vsub.f32 %v262, %v538
        %v559 = vsub.f32 %v263, %v538
        %v560 = vsub.f32 %v264, %v538
        %v561 = vsub.f32 %v265, %v538
        %v562 = vsub.f32 %v266, %v538
        %v563 = vsub.f32 %v267, %v538
        %v564 = vsub.f32 %v268, %v538
        %v565 = vsub.f32 %v269, %v538
        %v566 = vmul.f32 %v540, %v540
        %v567 = vmul.f32 %v541, %v541
        %v568 = vmul.f32 %v542, %v542
        %v569 = vmul.f32 %v543, %v543
        %v570 = vmul.f32 %v544, %v544
        %v571 = vmul.f32 %v545, %v545
        %v572 = vmul.f32 %v546, %v546
        %v573 = vmul.f32 %v547, %v547
        %v574 = vmul.f32 %v548, %v548
        %v575 = vmul.f32 %v549, %v549
        %v576 = vmul.f32 %v550, %v550
        %v577 = vmul.f32 %v551, %v551
        %v578 = vmul.f32 %v552, %v552
        %v579 = vmul.f32 %v553, %v553
        %v580 = vmul.f32 %v554, %v554
        %v581 = vmul.f32 %v555, %v555
        %v582 = vmul.f32 %v556, %v556
        %v583 = vmul.f32 %v557, %v557
        %v584 = vmul.f32 %v558, %v558
        %v585 = vmul.f32 %v559, %v559
        %v586 = vmul.f32 %v560, %v560
        %v587 = vmul.f32 %v561, %v561
        %v588 = vmul.f32 %v562, %v562
        %v589 = vmul.f32 %v563, %v563
        %v590 = vmul.f32 %v564, %v564
        %v591 = vmul.f32 %v565, %v565
        %v618 = vcombine.high %v566, %v566
        %v619 = vcombine.high %v567, %v567
        %v620 = vcombine.high %v568, %v568
        %v621 = vcombine.high %v569, %v569
        %v622 = vcombine.high %v570, %v570
        %v623 = vcombine.high %v571, %v571
        %v624 = vcombine.high %v572, %v572
        %v625 = vcombine.high %v573, %v573
        %v626 = vcombine.high %v574, %v574
        %v627 = vcombine.high %v575, %v575
        %v628 = vcombine.high %v576, %v576
        %v629 = vcombine.high %v577, %v577
        %v630 = vcombine.high %v578, %v578
        %v631 = vcombine.high %v579, %v579
        %v632 = vcombine.high %v580, %v580
        %v633 = vcombine.high %v581, %v581
        %v634 = vcombine.high %v582, %v582
        %v635 = vcombine.high %v583, %v583
        %v636 = vcombine.high %v584, %v584
        %v637 = vcombine.high %v585, %v585
        %v638 = vcombine.high %v586, %v586
        %v639 = vcombine.high %v587, %v587
        %v640 = vcombine.high %v588, %v588
        %v641 = vcombine.high %v589, %v589
        %v642 = vcombine.high %v590, %v590
        %v643 = vcombine.high %v591, %v591
        %v670 = vsel %vm348, %v566, 0.0
        %v671 = vsel %vm348, %v618, 0.0
        %v672 = vadd.f32 %v670, %v671
        %673 = vadd.xlane.f32.xlu0 %v672
        %v674 = vpop.xlane.xlu0 %673
        %v675 = vsel %vm348, %v567, 0.0
        %v676 = vsel %vm348, %v619, 0.0
        %v677 = vadd.f32 %v675, %v676
        %678 = vadd.xlane.f32.xlu0 %v677
        %v679 = vpop.xlane.xlu0 %678
        %v680 = vsel %vm348, %v568, 0.0
        %v681 = vsel %vm348, %v620, 0.0
        %v682 = vadd.f32 %v680, %v681
        %683 = vadd.xlane.f32.xlu0 %v682
        %v684 = vpop.xlane.xlu0 %683
        %v685 = vsel %vm348, %v569, 0.0
        %v686 = vsel %vm348, %v621, 0.0
        %v687 = vadd.f32 %v685, %v686
        %688 = vadd.xlane.f32.xlu0 %v687
        %v689 = vpop.xlane.xlu0 %688
        %v690 = vsel %vm348, %v570, 0.0
        %v691 = vsel %vm348, %v622, 0.0
        %v692 = vadd.f32 %v690, %v691
        %693 = vadd.xlane.f32.xlu0 %v692
        %v694 = vpop.xlane.xlu0 %693
        %v695 = vsel %vm348, %v571, 0.0
        %v696 = vsel %vm348, %v623, 0.0
        %v697 = vadd.f32 %v695, %v696
        %698 = vadd.xlane.f32.xlu0 %v697
        %v699 = vpop.xlane.xlu0 %698
        %v700 = vsel %vm348, %v572, 0.0
        %v701 = vsel %vm348, %v624, 0.0
        %v702 = vadd.f32 %v700, %v701
        %703 = vadd.xlane.f32.xlu0 %v702
        %v704 = vpop.xlane.xlu0 %703
        %v705 = vsel %vm348, %v573, 0.0
        %v706 = vsel %vm348, %v625, 0.0
        %v707 = vadd.f32 %v705, %v706
        %708 = vadd.xlane.f32.xlu0 %v707
        %v709 = vpop.xlane.xlu0 %708
        %v710 = vsel %vm348, %v574, 0.0
        %v711 = vsel %vm348, %v626, 0.0
        %v712 = vadd.f32 %v710, %v711
        %713 = vadd.xlane.f32.xlu0 %v712
        %v714 = vpop.xlane.xlu0 %713
        %v715 = vsel %vm348, %v575, 0.0
        %v716 = vsel %vm348, %v627, 0.0
        %v717 = vadd.f32 %v715, %v716
        %718 = vadd.xlane.f32.xlu0 %v717
        %v719 = vpop.xlane.xlu0 %718
        %v720 = vsel %vm348, %v576, 0.0
        %v721 = vsel %vm348, %v628, 0.0
        %v722 = vadd.f32 %v720, %v721
        %723 = vadd.xlane.f32.xlu0 %v722
        %v724 = vpop.xlane.xlu0 %723
        %v725 = vsel %vm348, %v577, 0.0
        %v726 = vsel %vm348, %v629, 0.0
        %v727 = vadd.f32 %v725, %v726
        %728 = vadd.xlane.f32.xlu0 %v727
        %v729 = vpop.xlane.xlu0 %728
        %v730 = vsel %vm348, %v578, 0.0
        %v731 = vsel %vm348, %v630, 0.0
        %v732 = vadd.f32 %v730, %v731
        %733 = vadd.xlane.f32.xlu0 %v732
        %v734 = vpop.xlane.xlu0 %733
        %v735 = vsel %vm348, %v579, 0.0
        %v736 = vsel %vm348, %v631, 0.0
        %v737 = vadd.f32 %v735, %v736
        %738 = vadd.xlane.f32.xlu0 %v737
        %v739 = vpop.xlane.xlu0 %738
        %v740 = vsel %vm348, %v580, 0.0
        %v741 = vsel %vm348, %v632, 0.0
        %v742 = vadd.f32 %v740, %v741
        %743 = vadd.xlane.f32.xlu0 %v742
        %v744 = vpop.xlane.xlu0 %743
        %v745 = vsel %vm348, %v581, 0.0
        %v746 = vsel %vm348, %v633, 0.0
        %v747 = vadd.f32 %v745, %v746
        %748 = vadd.xlane.f32.xlu0 %v747
        %v749 = vpop.xlane.xlu0 %748
        %v750 = vsel %vm348, %v582, 0.0
        %v751 = vsel %vm348, %v634, 0.0
        %v752 = vadd.f32 %v750, %v751
        %753 = vadd.xlane.f32.xlu0 %v752
        %v754 = vpop.xlane.xlu0 %753
        %v755 = vsel %vm348, %v583, 0.0
        %v756 = vsel %vm348, %v635, 0.0
        %v757 = vadd.f32 %v755, %v756
        %758 = vadd.xlane.f32.xlu0 %v757
        %v759 = vpop.xlane.xlu0 %758
        %v760 = vsel %vm348, %v584, 0.0
        %v761 = vsel %vm348, %v636, 0.0
        %v762 = vadd.f32 %v760, %v761
        %763 = vadd.xlane.f32.xlu0 %v762
        %v764 = vpop.xlane.xlu0 %763
        %v765 = vsel %vm348, %v585, 0.0
        %v766 = vsel %vm348, %v637, 0.0
        %v767 = vadd.f32 %v765, %v766
        %768 = vadd.xlane.f32.xlu0 %v767
        %v769 = vpop.xlane.xlu0 %768
        %v770 = vsel %vm348, %v586, 0.0
        %v771 = vsel %vm348, %v638, 0.0
        %v772 = vadd.f32 %v770, %v771
        %773 = vadd.xlane.f32.xlu0 %v772
        %v774 = vpop.xlane.xlu0 %773
        %v775 = vsel %vm348, %v587, 0.0
        %v776 = vsel %vm348, %v639, 0.0
        %v777 = vadd.f32 %v775, %v776
        %778 = vadd.xlane.f32.xlu0 %v777
        %v779 = vpop.xlane.xlu0 %778
        %v780 = vsel %vm348, %v588, 0.0
        %v781 = vsel %vm348, %v640, 0.0
        %v782 = vadd.f32 %v780, %v781
        %783 = vadd.xlane.f32.xlu0 %v782
        %v784 = vpop.xlane.xlu0 %783
        %v785 = vsel %vm348, %v589, 0.0
        %v786 = vsel %vm348, %v641, 0.0
        %v787 = vadd.f32 %v785, %v786
        %788 = vadd.xlane.f32.xlu0 %v787
        %v789 = vpop.xlane.xlu0 %788
        %v790 = vsel %vm348, %v590, 0.0
        %v791 = vsel %vm348, %v642, 0.0
        %v792 = vadd.f32 %v790, %v791
        %793 = vadd.xlane.f32.xlu0 %v792
        %v794 = vpop.xlane.xlu0 %793
        %v795 = vsel %vm348, %v591, 0.0
        %v796 = vsel %vm348, %v643, 0.0
        %v797 = vadd.f32 %v795, %v796
        %798 = vadd.xlane.f32.xlu0 %v797
        %v799 = vpop.xlane.xlu0 %798
        %v800 = vsel %vm348, %v674, 0.0
        %v801 = vsel %vm348, %v679, 0.0
        %v802 = vadd.f32 %v800, %v801
        %v803 = vsel %vm348, %v684, 0.0
        %v804 = vadd.f32 %v802, %v803
        %v805 = vsel %vm348, %v689, 0.0
        %v806 = vadd.f32 %v804, %v805
        %v807 = vsel %vm348, %v694, 0.0
        %v808 = vadd.f32 %v806, %v807
        %v809 = vsel %vm348, %v699, 0.0
        %v810 = vadd.f32 %v808, %v809
        %v811 = vsel %vm348, %v704, 0.0
        %v812 = vadd.f32 %v810, %v811
        %v813 = vsel %vm348, %v709, 0.0
        %v814 = vadd.f32 %v812, %v813
        %v815 = vsel %vm348, %v714, 0.0
        %v816 = vadd.f32 %v814, %v815
        %v817 = vsel %vm348, %v719, 0.0
        %v818 = vadd.f32 %v816, %v817
        %v819 = vsel %vm348, %v724, 0.0
        %v820 = vadd.f32 %v818, %v819
        %v821 = vsel %vm348, %v729, 0.0
        %v822 = vadd.f32 %v820, %v821
        %v823 = vsel %vm348, %v734, 0.0
        %v824 = vadd.f32 %v822, %v823
        %v825 = vsel %vm348, %v739, 0.0
        %v826 = vadd.f32 %v824, %v825
        %v827 = vsel %vm348, %v744, 0.0
        %v828 = vadd.f32 %v826, %v827
        %v829 = vsel %vm348, %v749, 0.0
        %v830 = vadd.f32 %v828, %v829
        %v831 = vsel %vm348, %v754, 0.0
        %v832 = vadd.f32 %v830, %v831
        %v833 = vsel %vm348, %v759, 0.0
        %v834 = vadd.f32 %v832, %v833
        %v835 = vsel %vm348, %v764, 0.0
        %v836 = vadd.f32 %v834, %v835
        %v837 = vsel %vm348, %v769, 0.0
        %v838 = vadd.f32 %v836, %v837
        %v839 = vsel %vm348, %v774, 0.0
        %v840 = vadd.f32 %v838, %v839
        %v841 = vsel %vm348, %v779, 0.0
        %v842 = vadd.f32 %v840, %v841
        %v843 = vsel %vm348, %v784, 0.0
        %v844 = vadd.f32 %v842, %v843
        %v845 = vsel %vm348, %v789, 0.0
        %v846 = vadd.f32 %v844, %v845
        %v847 = vsel %vm348, %v794, 0.0
        %v848 = vadd.f32 %v846, %v847
        %v849 = vsel %vm348, %v799, 0.0
        %v850 = vadd.f32 %v848, %v849
        %v851 = vmul.f32 %v850, 0.00015024039
        %v852 = vadd.f32 %v851, 1e-05
        %v853 = vrsqrt.pop %v852
        %v854 = vld [vmem:[%s238] sm:$0xf]
        %v855 = vld [vmem:[%s242] sm:$0xf]
        %v856 = vmul.f32 %v853, %v854
        %v857 = vmul.f32 %v530, %v856
        %v858 = vsub.f32 %v855, %v857
        %860 = vset.pattern.permute.xlu0 0
        %861 = vperm.xlu0 %860, %v856
        %v862 = vpop.permute.xlu0 %861
        %v864 = vunpack.c.l.s4 839922192
        %v865 = vunpack.c.0.s8 %v864
        %v866 = vlaneseq
        %v867 = vshrl.u32 %v866, 7
        %v868 = vsub.s32 %v865, %v867
        %v869 = vrot.slane %v862, %v868
        %v871 = vmul.f32 %v244, %v869
        %v872 = vmul.f32 %v245, %v869
        %v873 = vmul.f32 %v246, %v869
        %v874 = vmul.f32 %v247, %v869
        %v875 = vmul.f32 %v248, %v869
        %v876 = vmul.f32 %v249, %v869
        %v877 = vmul.f32 %v250, %v869
        %v878 = vmul.f32 %v251, %v869
        %v879 = vmul.f32 %v252, %v869
        %v880 = vmul.f32 %v253, %v869
        %v881 = vmul.f32 %v254, %v869
        %v882 = vmul.f32 %v255, %v869
        %v883 = vmul.f32 %v256, %v869
        %v884 = vmul.f32 %v257, %v869
        %v885 = vmul.f32 %v258, %v869
        %v886 = vmul.f32 %v259, %v869
        %v887 = vmul.f32 %v260, %v869
        %v888 = vmul.f32 %v261, %v869
        %v889 = vmul.f32 %v262, %v869
        %v890 = vmul.f32 %v263, %v869
        %v891 = vmul.f32 %v264, %v869
        %v892 = vmul.f32 %v265, %v869
        %v893 = vmul.f32 %v266, %v869
        %v894 = vmul.f32 %v267, %v869
        %v895 = vmul.f32 %v268, %v869
        %v896 = vmul.f32 %v269, %v869
        %898 = vset.pattern.permute.xlu0 0
        %899 = vperm.xlu0 %898, %v858
        %v900 = vpop.permute.xlu0 %899
        %v902 = vunpack.c.l.s4 839922192
        %v903 = vunpack.c.0.s8 %v902
        %v904 = vlaneseq
        %v905 = vshrl.u32 %v904, 7
        %v906 = vsub.s32 %v903, %v905
        %v907 = vrot.slane %v900, %v906
        %v909 = vadd.f32 %v871, %v907
        %v910 = vadd.f32 %v872, %v907
        %v911 = vadd.f32 %v873, %v907
        %v912 = vadd.f32 %v874, %v907
        %v913 = vadd.f32 %v875, %v907
        %v914 = vadd.f32 %v876, %v907
        %v915 = vadd.f32 %v877, %v907
        %v916 = vadd.f32 %v878, %v907
        %v917 = vadd.f32 %v879, %v907
        %v918 = vadd.f32 %v880, %v907
        %v919 = vadd.f32 %v881, %v907
        %v920 = vadd.f32 %v882, %v907
        %v921 = vadd.f32 %v883, %v907
        %v922 = vadd.f32 %v884, %v907
        %v923 = vadd.f32 %v885, %v907
        %v924 = vadd.f32 %v886, %v907
        %v925 = vadd.f32 %v887, %v907
        %v926 = vadd.f32 %v888, %v907
        %v927 = vadd.f32 %v889, %v907
        %v928 = vadd.f32 %v890, %v907
        %v929 = vadd.f32 %v891, %v907
        %v930 = vadd.f32 %v892, %v907
        %v931 = vadd.f32 %v893, %v907
        %v932 = vadd.f32 %v894, %v907
        %v933 = vadd.f32 %v895, %v907
        %v934 = vadd.f32 %v896, %v907
        %935 = vst [vmem:[%s233] sm:$0xff] %v909
        %936 = vst [vmem:[%s233 + $0x8] sm:$0xff] %v910
        %937 = vst [vmem:[%s233 + $0x10] sm:$0xff] %v911
        %938 = vst [vmem:[%s233 + $0x18] sm:$0xff] %v912
        %939 = vst [vmem:[%s233 + $0x20] sm:$0xff] %v913
        %940 = vst [vmem:[%s233 + $0x28] sm:$0xff] %v914
        %941 = vst [vmem:[%s233 + $0x30] sm:$0xff] %v915
        %942 = vst [vmem:[%s233 + $0x38] sm:$0xff] %v916
        %943 = vst [vmem:[%s233 + $0x40] sm:$0xff] %v917
        %944 = vst [vmem:[%s233 + $0x48] sm:$0xff] %v918
        %945 = vst [vmem:[%s233 + $0x50] sm:$0xff] %v919
        %946 = vst [vmem:[%s233 + $0x58] sm:$0xff] %v920
        %947 = vst [vmem:[%s233 + $0x60] sm:$0xff] %v921
        %948 = vst [vmem:[%s233 + $0x68] sm:$0xff] %v922
        %949 = vst [vmem:[%s233 + $0x70] sm:$0xff] %v923
        %950 = vst [vmem:[%s233 + $0x78] sm:$0xff] %v924
        %951 = vst [vmem:[%s233 + $0x80] sm:$0xff] %v925
        %952 = vst [vmem:[%s233 + $0x88] sm:$0xff] %v926
        %953 = vst [vmem:[%s233 + $0x90] sm:$0xff] %v927
        %954 = vst [vmem:[%s233 + $0x98] sm:$0xff] %v928
        %955 = vst [vmem:[%s233 + $0xa0] sm:$0xff] %v929
        %956 = vst [vmem:[%s233 + $0xa8] sm:$0xff] %v930
        %957 = vst [vmem:[%s233 + $0xb0] sm:$0xff] %v931
        %958 = vst [vmem:[%s233 + $0xb8] sm:$0xff] %v932
        %959 = vst [vmem:[%s233 + $0xc0] sm:$0xff] %v933
        %960 = vst [vmem:[%s233 + $0xc8] sm:$0xff] %v934
        %s961 = sand.u32 %s122, 1
        %s962 = scalar_lea.sflag [#allocation4], %s961
        %s963 = sand.u32 %s122, 1
        %s964 = smul.addr %s963, 208
        %s965 = scalar_lea.vmem [#allocation5], %s964
        // Predicated region
        $region37: #{tpu_custom_call.1} parent=31 // pred_check
          %p966 = pneg %p132
        $region38: #{tpu_custom_call.1} parent=31 // pred_check_branch
          %968 = sbr.rel (%p966) target = $region40
        $region39: #{tpu_custom_call.1} parent=31 // pred_region
          %s969 = smul.u32 26, %s24
          %s971 = ssub.s32 3328, 3328
          %972 = vsyncadd %s962, %s971
          %s973 = smul.addr %s25, 2
          %s974 = smul.addr %s969, 2
          %s975 = sadd.s32 %s973, %s974
          %s976 = smul.addr %s975, 64
          %s977 = scalar_lea.hbm %s3, %s976
          %s978 = sshll.u32 %s965, 4
          %s979 = int_to_ptr.vmem [resolvable:$true] %s978
          %984 = dma.vmem_to_hbm [thread:$0]  %s979, 3328, %s977, %s962, 128, 128, 8
        $region40: #{tpu_custom_call.1} parent=31 // pred_fallthru
          _
      $region32: #{tpu_custom_call.1} parent=5 // pred_fallthru
        _
      %p985 = scmp.le.s32.totalorder 2, %s15
      // Predicated region
      $region41: #{tpu_custom_call.1} parent=5 // pred_check
        %p986 = pneg %p985
      $region42: #{tpu_custom_call.1} parent=5 // pred_check_branch
        %988 = sbr.rel (%p986) target = $region44
      $region43: #{tpu_custom_call.1} parent=5 // pred_region
        %s989 = ssub.s32 %s15, 2
        // Predicated region
        $region45: #{tpu_custom_call.1} parent=43 // pred_check
          %p990 = pneg %p138
        $region46: #{tpu_custom_call.1} parent=43 // pred_check_branch
          %992 = sbr.rel (%p990) target = $region48
        $region47: #{tpu_custom_call.1} parent=43 // pred_region
          %s993 = sand.u32 %s123, 1
          %s994 = scalar_lea.sflag [#allocation4], %s993
          %s995 = sand.u32 %s123, 1
          %s996 = smul.addr %s995, 208
          %s997 = scalar_lea.vmem [#allocation5], %s996
          %998 = dma.done %s994, 3328
        $region48: #{tpu_custom_call.1} parent=43 // pred_fallthru
          _
      $region44: #{tpu_custom_call.1} parent=5 // pred_fallthru
        _
    $region6: #{tpu_custom_call.1} parent=1 // loop_footer
      %s19 = sadd.s32 1, %s15
    $region7: #{tpu_custom_call.1} parent=1 // loop_footer_branch
      %14 = sbr.rel target = $region3
    $region8: #{tpu_custom_call.1} parent=1 // loop_exit
      _
    %999 = vsyncpa [#allocation3], 1
    %s1000 = scalar_lea.sflag [#allocation3], 1
    %1001 = vsyncpa %s1000, 1
    %1002 = vsyncpa [#allocation4], 1
    %s1003 = scalar_lea.sflag [#allocation4], 1
    %1004 = vsyncpa %s1003, 1

</llo_original>
